<compile_context>
chip_gen: v6e
topology: v6e:2x2x1
jax: 0.10.0
libtpu: 0.0.40
codegen_flags: <defaults>
</compile_context>

<pallas_src>
import jax
import jax.numpy as jnp
from jax.experimental import pallas as pl
from jax.experimental.pallas import tpu as pltpu


def _linreg_kernel(params_ref, x_ref, o_ref):
    # params_ref lives in SMEM: [slope, bias] as two f32 scalars.
    slope = params_ref[0]
    bias = params_ref[1]
    x = x_ref[...]
    # Compute in f32 so a bf16 input does not degrade the bias precision.
    o_ref[...] = (slope * x.astype(jnp.float32) + bias).astype(o_ref.dtype)


def linear_regression(x, slope, bias, *,
                      block_rows=512, block_cols=1024,
                      vmem_limit_bytes=48 * 1024 * 1024):
    """y = slope * x + bias via a Pallas TPU kernel.

    x: any-shape float array; flattened to 2-D (rows, last_dim) internally.
    slope, bias: python/JAX scalars.
    """
    orig_shape = x.shape
    if x.ndim == 0:
        x2 = x.reshape(1, 1)
    elif x.ndim == 1:
        x2 = x.reshape(1, -1)
    else:
        x2 = x.reshape(-1, x.shape[-1])

    R, C = x2.shape
    params = jnp.array([slope, bias], dtype=jnp.float32)

    # Block sizes: full extent when the array is small (satisfies the
    # (8,128) rule via "equal the full array dims"); otherwise large tiles
    # aligned to the sublane (8) / lane (128) granularity.
    if R <= block_rows:
        br = R
    else:
        br = max(8, (block_rows // 8) * 8)
    if C <= block_cols:
        bc = C
    else:
        bc = max(128, (block_cols // 128) * 128)

    grid = (pl.cdiv(R, br), pl.cdiv(C, bc))

    out = pl.pallas_call(
        _linreg_kernel,
        out_shape=jax.ShapeDtypeStruct((R, C), x2.dtype),
        grid_spec=pltpu.PrefetchScalarGridSpec(
            num_scalar_prefetch=0,
            grid=grid,
            in_specs=[
                pl.BlockSpec(memory_space=pltpu.SMEM),             # [slope, bias]
                pl.BlockSpec((br, bc), lambda i, j: (i, j)),       # x tile
            ],
            out_specs=pl.BlockSpec((br, bc), lambda i, j: (i, j)),  # y tile
        ),
        compiler_params=pltpu.CompilerParams(
            dimension_semantics=("parallel", "parallel"),
            vmem_limit_bytes=vmem_limit_bytes,
        ),
    )(params, x2)
    return out.reshape(orig_shape)


if __name__ == "__main__":
    # Parameters matching the module defaults: w=0.0, b=5.0
    slope = 0.0
    bias = 5.0

    key = jax.random.PRNGKey(0)

    # Small shape consistent with the module's elementwise forward.
    x = jax.random.normal(key, (16, 128), dtype=jnp.float32)
    y = jax.block_until_ready(linear_regression(x, slope, bias))
    y_ref = slope * x + bias
    assert jnp.allclose(y, y_ref, atol=1e-6), "mismatch vs reference (small)"

    # Sanity check that exercises the 2-D tiled path (multi-block grid).
    x_big = jax.random.normal(key, (1024, 2048), dtype=jnp.float32)
    y_big = jax.block_until_ready(linear_regression(x_big, 1.5, -2.0))
    y_big_ref = 1.5 * x_big + (-2.0)
    assert jnp.allclose(y_big, y_big_ref, atol=1e-5), "mismatch vs reference (tiled)"

    print("KERNEL_OK")
</pallas_src>

<mosaic_0001>
module attributes {stable_mosaic.version = 11 : i64} {
  func.func @_linreg_kernel(%arg0: i32, %arg1: i32, %arg2: memref<2xf32, #tpu.memory_space<smem>>, %arg3: memref<16x128xf32, #tpu.memory_space<vmem>>, %arg4: memref<16x128xf32, #tpu.memory_space<vmem>>) attributes {dimension_semantics = [#tpu.dimension_semantics<parallel>, #tpu.dimension_semantics<parallel>], iteration_bounds = array<i64: 1, 1>, scalar_prefetch = 0 : i64, scratch_operands = 0 : i64, tpu.core_type = #tpu.core_type<tc>, window_params = [{transform_indices = @transform_0, window_bounds = array<i64: 2>}, {transform_indices = @transform_1, window_bounds = array<i64: 16, 128>}, {transform_indices = @transform_2, window_bounds = array<i64: 16, 128>}]} {
    %c0 = arith.constant 0 : index
    %0 = memref.load %arg2[%c0] : memref<2xf32, #tpu.memory_space<smem>>
    %c1 = arith.constant 1 : index
    %1 = memref.load %arg2[%c1] : memref<2xf32, #tpu.memory_space<smem>>
    %c0_0 = arith.constant 0 : index
    %c0_1 = arith.constant 0 : index
    %2 = vector.load %arg3[%c0_0, %c0_1] : memref<16x128xf32, #tpu.memory_space<vmem>>, vector<16x128xf32>
    %3 = vector.broadcast %0 : f32 to vector<16x128xf32>
    %4 = arith.mulf %3, %2 : vector<16x128xf32>
    %5 = vector.broadcast %1 : f32 to vector<16x128xf32>
    %6 = arith.addf %4, %5 : vector<16x128xf32>
    %c0_2 = arith.constant 0 : index
    %c0_3 = arith.constant 0 : index
    %7 = vector.load %arg4[%c0_2, %c0_3] : memref<16x128xf32, #tpu.memory_space<vmem>>, vector<16x128xf32>
    tpu.vector_store %arg4[%c0_2, %c0_3], %6 {strides = array<i32>} : memref<16x128xf32, #tpu.memory_space<vmem>>, vector<16x128xf32>,
    return
  }
  func.func @transform_0(%arg0: i32, %arg1: i32) -> i32 {
    %c0_i32 = arith.constant 0 : i32
    %c0_i32_0 = arith.constant 0 : i32
    return %c0_i32 : i32
  }
  func.func @transform_1(%arg0: i32, %arg1: i32) -> (i32, i32) {
    %c0_i32 = arith.constant 0 : i32
    return %arg0, %arg1 : i32, i32
  }
  func.func @transform_2(%arg0: i32, %arg1: i32) -> (i32, i32) {
    %c0_i32 = arith.constant 0 : i32
    return %arg0, %arg1 : i32, i32
  }
}

</mosaic_0001>

<llo_original>
// kernel: tpu_custom_call.1
$region0: #{tpu_custom_call.1}
  #allocation0 [shape = 'u32[]', space=smem, size = 0x4, offset = 0x4, fixed_abs, tag = 'smem constant byte address 0x4 - core index']
  #allocation1 [shape = 'u32[144,128]{1,0:T(1,128)}', space=vmem, size = 0x12000, scoped, tag = 'internal scratch']
  %s0 = inlined_call_operand.hbm [shape: f32[2], index: 0, kind: input, shape index: {}]
  %s1 = inlined_call_operand.hbm [shape: f32[16,128], index: 1, kind: input, shape index: {}]
  %s2 = inlined_call_operand.hbm [shape: f32[16,128], index: 2, kind: output, shape index: {}]
  %s3 = sld [smem:[#allocation0]]
  $region26: #{tpu_custom_call.1} parent=0
    _
  %s5 = ssub.s32 1, %s3
  %s6 = scalar_select 0, %s5, %s3
  $region1: #{tpu_custom_call.1} parent=0
    #allocation2 [shape = 'u8[512]{0}', space=smem, size = 0x200, scoped, tag = 'input window, operand 0, single buffered']
    #allocation3 [shape = 's32[1]{0}', space=sflag, size = 0x4, scoped, tag = 'scoped memory for tpu_custom_call.1']
    #allocation4 [shape = 's32[1]{0}', space=sflag, size = 0x4, scoped, tag = 'scoped memory for tpu_custom_call.1']
    #allocation5 [shape = 's32[1]{0}', space=sflag, size = 0x4, scoped, tag = 'scoped memory for tpu_custom_call.1']
    #allocation6 [shape = 'u8[8192]{0}', space=vmem, size = 0x2000, scoped, tag = 'input window, operand 1, single buffered']
    #allocation7 [shape = 'u8[8192]{0}', space=vmem, size = 0x2000, scoped, tag = 'output window, operand 0, single buffered']
    %7 = vsyncpa [#allocation5], 0
    %8 = vsyncpa [#allocation3], 0
    %9 = vsyncpa [#allocation4], 0
    // Predicated region
    $region2: #{tpu_custom_call.1} parent=1 // pred_check
      _
    $region3: #{tpu_custom_call.1} parent=1 // pred_check_branch
      %11 = sbr.rel (0) target = $region5
    $region4: #{tpu_custom_call.1} parent=1 // pred_region
      %s13 = ssub.s32 16, 16
      %14 = vsyncadd [#allocation5], %s13
      %17 = dma.hbm_to_smem %s0, 16, [#allocation2], [#allocation5]
    $region5: #{tpu_custom_call.1} parent=1 // pred_fallthru
      _
    // Predicated region
    $region6: #{tpu_custom_call.1} parent=1 // pred_check
      _
    $region7: #{tpu_custom_call.1} parent=1 // pred_check_branch
      %19 = sbr.rel (0) target = $region9
    $region8: #{tpu_custom_call.1} parent=1 // pred_region
      %s21 = ssub.s32 256, 256
      %22 = vsyncadd [#allocation3], %s21
      %s23 = sshll.u32 [#allocation6], 4
      %s24 = int_to_ptr.vmem [resolvable:$true] %s23
      %29 = dma.hbm_to_vmem [thread:$0]  %s1, 256, %s24, [#allocation3], 128, 128, 8
    $region9: #{tpu_custom_call.1} parent=1 // pred_fallthru
      _
    // Predicated region
    $region10: #{tpu_custom_call.1} parent=1 // pred_check
      _
    $region11: #{tpu_custom_call.1} parent=1 // pred_check_branch
      %31 = sbr.rel (0) target = $region13
    $region12: #{tpu_custom_call.1} parent=1 // pred_region
      %32 = dma.done [#allocation5], 16
    $region13: #{tpu_custom_call.1} parent=1 // pred_fallthru
      _
    // Predicated region
    $region14: #{tpu_custom_call.1} parent=1 // pred_check
      _
    $region15: #{tpu_custom_call.1} parent=1 // pred_check_branch
      %34 = sbr.rel (0) target = $region17
    $region16: #{tpu_custom_call.1} parent=1 // pred_region
      %35 = dma.done [#allocation3], 256
    $region17: #{tpu_custom_call.1} parent=1 // pred_fallthru
      _
    %36 = sfence
    %s37 = sld [smem:[#allocation2]]
    %s38 = sld [smem:[#allocation2 + $0x1]]
    %v39 = vld [vmem:[#allocation6] sm:$0xff]
    %v40 = vld [vmem:[#allocation6 + $0x8] sm:$0xff]
    %v41 = vstv %s37
    %v42 = vmul.f32 %v41, %v39
    %v43 = vmul.f32 %v41, %v40
    %v44 = vstv %s38
    %v45 = vadd.f32 %v42, %v44
    %v46 = vadd.f32 %v43, %v44
    %47 = vst [vmem:[#allocation7] sm:$0xff] %v45
    %48 = vst [vmem:[#allocation7 + $0x8] sm:$0xff] %v46
    // Predicated region
    $region18: #{tpu_custom_call.1} parent=1 // pred_check
      _
    $region19: #{tpu_custom_call.1} parent=1 // pred_check_branch
      %50 = sbr.rel (0) target = $region21
    $region20: #{tpu_custom_call.1} parent=1 // pred_region
      %s52 = ssub.s32 256, 256
      %53 = vsyncadd [#allocation4], %s52
      %s54 = sshll.u32 [#allocation7], 4
      %s55 = int_to_ptr.vmem [resolvable:$true] %s54
      %60 = dma.vmem_to_hbm [thread:$0]  %s55, 256, %s2, [#allocation4], 128, 128, 8
    $region21: #{tpu_custom_call.1} parent=1 // pred_fallthru
      _
    // Predicated region
    $region22: #{tpu_custom_call.1} parent=1 // pred_check
      _
    $region23: #{tpu_custom_call.1} parent=1 // pred_check_branch
      %62 = sbr.rel (0) target = $region25
    $region24: #{tpu_custom_call.1} parent=1 // pred_region
      %63 = dma.done [#allocation4], 256
    $region25: #{tpu_custom_call.1} parent=1 // pred_fallthru
      _
    %64 = vsyncpa [#allocation3], 1
    %65 = vsyncpa [#allocation4], 1
    %66 = vsyncpa [#allocation5], 1

</llo_original>
